<compile_context>
chip_gen: v5e
topology: v5e:2x2
jax: 0.10.0
libtpu: 0.0.40
codegen_flags: <defaults>
</compile_context>

<pallas_src>
import functools

import jax
import jax.numpy as jnp
from jax import lax
from jax.experimental import pallas as pl
from jax.experimental.pallas import tpu as pltpu


_VMEM_BUDGET = 24 * 1024 * 1024   # double-buffered block working-set target (fits v7x 64 MiB)
_VMEM_LIMIT = 48 * 1024 * 1024    # scoped VMEM limit handed to Mosaic


def _round_up(v, m):
    return (v + m - 1) // m * m


def _pick_tile(full, candidates):
    """Largest candidate that evenly divides `full`; fall back to full extent."""
    for c in candidates:
        if c <= full and full % c == 0:
            return c
    return full


def _largest_div_tile(total, cap):
    """Largest multiple of 128 dividing `total` (itself a multiple of 128), <= cap."""
    cap = max(128, min(cap, total))
    best, t = 128, 128
    while t <= cap:
        if total % t == 0:
            best = t
        t += 128
    return best


def _pick_channel_tile(C, per_chan_bytes, budget):
    """Largest multiple-of-8 divisor of C whose block fits the VMEM budget."""
    if C % 8 != 0:
        return C
    cands = [c for c in range(C, 0, -8) if C % c == 0]
    for c in cands:
        if c * per_chan_bytes <= budget:
            return c
    return cands[-1]


def _im2col(x_pad, K, dilation, stride, Lout):
    """(N, C, Lp) -> (N, C, K, Lout): stacked strided tap windows (wrapper-side)."""
    N, C, _ = x_pad.shape
    taps = [
        lax.slice(
            x_pad,
            (0, 0, k * dilation),
            (N, C, k * dilation + stride * (Lout - 1) + 1),
            (1, 1, stride),
        )
        for k in range(K)
    ]
    return jnp.stack(taps, axis=2)


def _apply_act(acc, act, slope):
    """Fused element-wise epilogue on the f32 accumulator (VPU/EUP slots are idle)."""
    if act is None:
        return acc
    if act == "relu":
        return jnp.maximum(acc, 0.0)
    if act == "sigmoid":
        return jax.nn.sigmoid(acc)
    if act == "prelu":
        return jnp.where(acc >= 0.0, acc, acc * slope)
    raise ValueError(act)


# ---------------------------------------------------------------------------
# Grouped / dense path: one cin_g*K-deep MXU contraction per tile.
# Batch is folded into the lane axis; Cout-tile axis is the innermost grid axis
# so the activation block stays resident while only weights re-stream.
# ---------------------------------------------------------------------------
def _grouped_conv_mxu_kernel(x_ref, w_ref, b_ref, s_ref, o_ref, *, act):
    # x_ref: (1, cink_p, LT)  im2col block (contraction x lane-dense N*Lout)
    # w_ref: (1, CT, cink_p)  weight tile, contraction last
    # b_ref/s_ref: (1, CT, 1) f32 bias / PReLU slope
    # o_ref: (1, CT, LT)
    acc = jnp.dot(w_ref[0], x_ref[0], preferred_element_type=jnp.float32)
    acc = acc + b_ref[0]
    acc = _apply_act(acc, act, s_ref[0])
    o_ref[0] = acc.astype(o_ref.dtype)


def _grouped_conv(x, weight, bias, slope, *, stride, dilation, groups, act,
                  out_dtype, compute_dtype):
    N, Cin, L = x.shape
    Cout, cin_g, K = weight.shape
    cout_g = Cout // groups

    pad = (K - 1) // 2 * dilation
    Lout = (L + 2 * pad - dilation * (K - 1) - 1) // stride + 1
    Lout_pad = _round_up(Lout, 128)
    NL = N * Lout_pad

    if compute_dtype is not None:
        x = x.astype(compute_dtype)
        weight = weight.astype(compute_dtype)
    xb = x.dtype.itemsize
    ob = jnp.dtype(out_dtype).itemsize
    sub_mult = 8 * (4 // xb)                 # sublane pack: 8 rows f32, 16 rows bf16
    cink = cin_g * K
    cink_p = _round_up(cink, sub_mult)

    # ---- build (G, cink, N, Lout) activation columns ----
    if K == 1 and stride == 1:
        # 1x1 fast path: no tap gathering at all, just regroup + fold batch.
        xg = x.reshape(N, groups, cin_g, L).transpose(1, 2, 0, 3)
    else:
        x_pad = jnp.pad(x, ((0, 0), (0, 0), (pad, pad)))
        cols = _im2col(x_pad, K, dilation, stride, Lout)               # (N, Cin, K, Lout)
        xg = cols.reshape(N, groups, cin_g, K, Lout).transpose(1, 2, 3, 0, 4)
        xg = xg.reshape(groups, cink, N, Lout)
    if cink_p != cink or Lout_pad != Lout:
        xg = jnp.pad(xg, ((0, 0), (0, cink_p - cink), (0, 0), (0, Lout_pad - Lout)))
    x_cols = xg.reshape(groups, cink_p, NL)        # batch folded into the lane axis

    w2 = weight.reshape(groups, cout_g, cink)      # contraction index = ci*K + k
    if cink_p != cink:
        w2 = jnp.pad(w2, ((0, 0), (0, 0), (0, cink_p - cink)))
    b2 = bias.astype(jnp.float32).reshape(groups, cout_g, 1)
    s2 = slope.astype(jnp.float32).reshape(groups, cout_g, 1)

    # ---- tile selection against the VMEM budget ----
    CT = _pick_tile(cout_g, (256, 128))            # 256 matches v6e/v7x MXU width
    fixed = 2 * (CT * cink_p * xb + 2 * CT * 4)    # weight + bias + slope (dbl-buffered)
    per_lane = 2 * (cink_p * xb + CT * ob) + CT * 4
    LT = _largest_div_tile(NL, max(128, (_VMEM_BUDGET - fixed) // max(1, per_lane)))
    if groups * (cout_g // CT) * (NL // LT) < 2 and NL >= 256:
        LT = _largest_div_tile(NL, NL // 2)        # keep >=2 steps for v7x's 2nd TC
    grid = (groups, NL // LT, cout_g // CT)        # Cout tile innermost: x block resident

    out = pl.pallas_call(
        functools.partial(_grouped_conv_mxu_kernel, act=act),
        out_shape=jax.ShapeDtypeStruct((groups, cout_g, NL), out_dtype),
        grid_spec=pltpu.PrefetchScalarGridSpec(
            num_scalar_prefetch=0,
            grid=grid,
            in_specs=[
                pl.BlockSpec((1, cink_p, LT), lambda g, l, c: (g, 0, l)),
                pl.BlockSpec((1, CT, cink_p), lambda g, l, c: (g, c, 0)),
                pl.BlockSpec((1, CT, 1), lambda g, l, c: (g, c, 0)),
                pl.BlockSpec((1, CT, 1), lambda g, l, c: (g, c, 0)),
            ],
            out_specs=pl.BlockSpec((1, CT, LT), lambda g, l, c: (g, c, l)),
        ),
        compiler_params=pltpu.CompilerParams(
            dimension_semantics=("parallel",) * len(grid),
            vmem_limit_bytes=_VMEM_LIMIT),
    )(x_cols, w2, b2, s2)

    out = out.reshape(groups, cout_g, N, Lout_pad).transpose(2, 0, 1, 3)
    out = out.reshape(N, Cout, Lout_pad)
    # TODO(synk): keep activations in the lane-padded layout across the whole
    # Recurrent block instead of slicing back here (saves an HBM round trip).
    return out[:, :, :Lout]


# ---------------------------------------------------------------------------
# Depthwise path (cin_g == 1): VPU tap-sum over an in-kernel halo tile.
# Input is phase-decomposed by stride (~1x activation, no Kx im2col copy).
# ---------------------------------------------------------------------------
def _depthwise_halo_kernel(x_ref, w_ref, b_ref, s_ref, o_ref, *,
                           K, dilation, stride, act):
    # x_ref: (1, S, CT, Lph)   phase-decomposed halo tile
    # w_ref: (K, CT, 1)        per-channel taps (broadcast over lanes)
    # b_ref/s_ref: (CT, 1)     f32 bias / PReLU slope
    # o_ref: (1, CT, Lout_pad)
    Lout_pad = o_ref.shape[-1]
    phases = [x_ref[0, p] for p in range(stride)]   # resident tile, loaded once

    def tap(k):
        off = k * dilation
        p, o = off % stride, off // stride           # static phase / halo shift
        xs = lax.slice_in_dim(phases[p], o, o + Lout_pad, axis=1)
        return xs.astype(jnp.float32) * w_ref[k].astype(jnp.float32)

    acc = tap(0) + b_ref[...]
    for k in range(1, K):                            # static, K <= 5 in this model
        acc = acc + tap(k)
    acc = _apply_act(acc, act, s_ref[...])
    o_ref[0] = acc.astype(o_ref.dtype)


def _depthwise_conv(x, weight, bias, slope, *, stride, dilation, act, out_dtype):
    N, C, L = x.shape
    K = weight.shape[-1]
    S = stride
    pad = (K - 1) // 2 * dilation
    Lout = (L + 2 * pad - dilation * (K - 1) - 1) // stride + 1
    Lout_pad = _round_up(Lout, 128)
    Lph = ((K - 1) * dilation) // S + Lout_pad       # halo length per stride-phase
    total = S * Lph
    pad_r = total - pad - L
    assert pad_r >= 0

    # Phase-decomposed halo layout: x_ph[n, p, c, i] = x_padded[n, c, i*S + p]
    x_full = jnp.pad(x, ((0, 0), (0, 0), (pad, pad_r)))
    x_ph = jnp.transpose(x_full.reshape(N, C, Lph, S), (0, 3, 1, 2))

    w = jnp.transpose(weight[:, 0, :], (1, 0))[:, :, None]            # (K, C, 1)
    b = bias.astype(jnp.float32).reshape(C, 1)
    s = slope.astype(jnp.float32).reshape(C, 1)

    xb = x.dtype.itemsize
    ob = jnp.dtype(out_dtype).itemsize
    # x + out blocks double-buffered + rough allowance for in-kernel tap temporaries.
    per_chan = 2 * S * Lph * xb + 2 * Lout_pad * ob + (K + 2) * Lout_pad * 4
    CT = _pick_channel_tile(C, per_chan, _VMEM_BUDGET)
    if N * (C // CT) < 2:                            # keep v7x's 2nd TC busy
        smaller = [c for c in range(C // 2, 0, -8) if C % c == 0 and c % 8 == 0]
        if smaller:
            CT = smaller[0]
    grid = (N, C // CT)
    # TODO(synk): also tile along L for extremely long sequences (full Lout per
    # block is kept here since TDANet frame counts fit the VMEM budget).

    out = pl.pallas_call(
        functools.partial(_depthwise_halo_kernel, K=K, dilation=dilation,
                          stride=S, act=act),
        out_shape=jax.ShapeDtypeStruct((N, C, Lout_pad), out_dtype),
        grid_spec=pltpu.PrefetchScalarGridSpec(
            num_scalar_prefetch=0,
            grid=grid,
            in_specs=[
                pl.BlockSpec((1, S, CT, Lph), lambda n, c: (n, 0, c, 0)),
                pl.BlockSpec((K, CT, 1), lambda n, c: (0, c, 0)),
                pl.BlockSpec((CT, 1), lambda n, c: (c, 0)),
                pl.BlockSpec((CT, 1), lambda n, c: (c, 0)),
            ],
            out_specs=pl.BlockSpec((1, CT, Lout_pad), lambda n, c: (n, c, 0)),
        ),
        compiler_params=pltpu.CompilerParams(
            dimension_semantics=("parallel", "parallel"),
            vmem_limit_bytes=_VMEM_LIMIT),
    )(x_ph, w, b, s)

    return out[:, :, :Lout]


# ---------------------------------------------------------------------------
# Public wrapper: torch.nn.Conv1d(nIn, nOut, K, stride, dilation=d,
#                 padding=(K-1)//2*d, groups=groups) forward (+ fused epilogue).
# ---------------------------------------------------------------------------
def dilated_conv(x, weight, bias=None, *, stride=1, dilation=1, groups=1,
                 act=None, act_param=None, compute_dtype=jnp.bfloat16):
    """x: (N, Cin, L); weight: (Cout, Cin//groups, K); bias: (Cout,) or None.

    act: None | "relu" | "sigmoid" | "prelu" (act_param = PReLU slope, scalar or (Cout,)).
    compute_dtype: cast dtype for the MXU (grouped/dense) path only; accumulation
    stays f32.  The depthwise/VPU path keeps the input dtype (v5e VPU has no bf16).
    """
    N, Cin, L = x.shape
    Cout, cin_g, K = weight.shape
    assert Cin == cin_g * groups and Cout % groups == 0
    if act not in (None, "relu", "sigmoid", "prelu"):
        raise ValueError(f"unsupported fused activation: {act}")
    out_dtype = x.dtype

    if bias is None:
        bias = jnp.zeros((Cout,), jnp.float32)
    if act == "prelu":
        assert act_param is not None
        slope = jnp.broadcast_to(
            jnp.asarray(act_param, jnp.float32).reshape(-1), (Cout,))
    else:
        slope = jnp.zeros((Cout,), jnp.float32)

    if groups == Cin and cin_g == 1 and Cout == Cin:
        return _depthwise_conv(x, weight, bias, slope, stride=stride,
                               dilation=dilation, act=act, out_dtype=out_dtype)
    return _grouped_conv(x, weight, bias, slope, stride=stride, dilation=dilation,
                         groups=groups, act=act, out_dtype=out_dtype,
                         compute_dtype=compute_dtype)


def _reference_conv(x, weight, bias, *, stride, dilation, groups,
                    act=None, act_param=None):
    """Plain-JAX reference matching torch.nn.Conv1d (+ optional activation)."""
    K = weight.shape[-1]
    pad = (K - 1) // 2 * dilation
    out = lax.conv_general_dilated(
        x, weight,
        window_strides=(stride,),
        padding=[(pad, pad)],
        rhs_dilation=(dilation,),
        dimension_numbers=("NCH", "OIH", "NCH"),
        feature_group_count=groups,
    )
    if bias is not None:
        out = out + bias.reshape(1, -1, 1)
    if act == "relu":
        out = jnp.maximum(out, 0.0)
    elif act == "sigmoid":
        out = jax.nn.sigmoid(out)
    elif act == "prelu":
        sl = jnp.broadcast_to(jnp.asarray(act_param, jnp.float32).reshape(-1),
                              (out.shape[1],)).reshape(1, -1, 1)
        out = jnp.where(out >= 0, out, out * sl)
    return out


if __name__ == "__main__":
    key = jax.random.PRNGKey(0)
    N, L = 2, 64

    # (name, Cin, Cout, K, stride, dilation, groups, use_bias, act) — conv shapes
    # appearing inside Recurrent / UConvBlock, at small test sizes.
    cases = [
        ("proj_1x1 pointwise (K=1, g=1)",        16, 32, 1, 1, 1, 1,  True,  None),
        ("res_conv 1x1, no bias",                32, 16, 1, 1, 1, 1,  False, None),
        ("grouped 1x1 (g=2)",                    16, 32, 1, 1, 1, 2,  True,  None),
        ("dilated K=3 d=2 (g=1)",                16, 16, 3, 1, 2, 1,  True,  None),
        ("spp_dw[0] depthwise K=5 s=1",          16, 16, 5, 1, 1, 16, True,  None),
        ("spp_dw[k] depthwise K=5 s=2",          16, 16, 5, 2, 1, 16, True,  None),
        ("FFN.dwconv K=5 s=1 + fused ReLU",      16, 16, 5, 1, 1, 16, True,  "relu"),
        ("concat_block 1x1 dw + fused PReLU",    16, 16, 1, 1, 1, 16, True,  "prelu"),
        ("pointwise + fused Sigmoid",            16, 16, 1, 1, 1, 1,  True,  "sigmoid"),
    ]

    for name, cin, cout, ksz, st, d, g, use_bias, act in cases:
        key, kx, kw, kb = jax.random.split(key, 4)
        x = jax.random.normal(kx, (N, cin, L), dtype=jnp.float32)
        w = 0.1 * jax.random.normal(kw, (cout, cin // g, ksz), dtype=jnp.float32)
        b = (0.1 * jax.random.normal(kb, (cout,), dtype=jnp.float32)
             if use_bias else None)
        ap = 0.25 if act == "prelu" else None

        out = dilated_conv(x, w, b, stride=st, dilation=d, groups=g,
                           act=act, act_param=ap, compute_dtype=jnp.float32)
        out = jax.block_until_ready(out)

        ref = _reference_conv(x, w, b, stride=st, dilation=d, groups=g,
                              act=act, act_param=ap)
        assert out.shape == ref.shape, (name, out.shape, ref.shape)
        max_err = float(jnp.max(jnp.abs(out - ref)))
        assert jnp.allclose(out, ref, atol=2e-3, rtol=2e-3), (name, max_err)

    # bf16 MXU-path smoke test (default compute_dtype) — looser tolerance.
    key, kx, kw, kb = jax.random.split(key, 4)
    x = jax.random.normal(kx, (N, 16, L), dtype=jnp.float32)
    w = 0.1 * jax.random.normal(kw, (32, 16, 1), dtype=jnp.float32)
    b = 0.1 * jax.random.normal(kb, (32,), dtype=jnp.float32)
    out = jax.block_until_ready(dilated_conv(x, w, b))
    ref = _reference_conv(x, w, b, stride=1, dilation=1, groups=1)
    assert out.shape == ref.shape
    assert jnp.allclose(out, ref, atol=1e-1, rtol=1e-1), \
        float(jnp.max(jnp.abs(out - ref)))

    print("KERNEL_OK")
</pallas_src>

<mosaic_0001>
module attributes {stable_mosaic.version = 11 : i64} {
  func.func @_grouped_conv_mxu_kernel(%arg0: i32, %arg1: i32, %arg2: i32, %arg3: memref<1x16x128xf32, #tpu.memory_space<vmem>>, %arg4: memref<1x32x16xf32, #tpu.memory_space<vmem>>, %arg5: memref<1x32x1xf32, #tpu.memory_space<vmem>>, %arg6: memref<1x32x1xf32, #tpu.memory_space<vmem>>, %arg7: memref<1x32x128xf32, #tpu.memory_space<vmem>>) attributes {dimension_semantics = [#tpu.dimension_semantics<parallel>, #tpu.dimension_semantics<parallel>, #tpu.dimension_semantics<parallel>], iteration_bounds = array<i64: 1, 2, 1>, scalar_prefetch = 0 : i64, scratch_operands = 0 : i64, tpu.core_type = #tpu.core_type<tc>, window_params = [{transform_indices = @transform_0, window_bounds = array<i64: 1, 16, 128>}, {transform_indices = @transform_1, window_bounds = array<i64: 1, 32, 16>}, {transform_indices = @transform_2, window_bounds = array<i64: 1, 32, 1>}, {transform_indices = @transform_3, window_bounds = array<i64: 1, 32, 1>}, {transform_indices = @transform_4, window_bounds = array<i64: 1, 32, 128>}]} {
    %c0 = arith.constant 0 : index
    %c0_0 = arith.constant 0 : index
    %c0_1 = arith.constant 0 : index
    %0 = vector.load %arg4[%c0, %c0_0, %c0_1] : memref<1x32x16xf32, #tpu.memory_space<vmem>>, vector<1x32x16xf32>
    %1 = vector.shape_cast %0 : vector<1x32x16xf32> to vector<32x16xf32>
    %c0_2 = arith.constant 0 : index
    %c0_3 = arith.constant 0 : index
    %c0_4 = arith.constant 0 : index
    %2 = vector.load %arg3[%c0_2, %c0_3, %c0_4] : memref<1x16x128xf32, #tpu.memory_space<vmem>>, vector<1x16x128xf32>
    %3 = vector.shape_cast %2 : vector<1x16x128xf32> to vector<16x128xf32>
    %cst = arith.constant dense<0.000000e+00> : vector<32x128xf32>
    %4 = tpu.matmul %1, %3, %cst {dimension_numbers = #tpu.dot_dimension_numbers<[1], [0], [0], [1], [0, 0, 1, 1], [], []>} : vector<32x16xf32>, vector<16x128xf32>, vector<32x128xf32> -> vector<32x128xf32>
    %c0_5 = arith.constant 0 : index
    %c0_6 = arith.constant 0 : index
    %c0_7 = arith.constant 0 : index
    %5 = vector.load %arg5[%c0_5, %c0_6, %c0_7] : memref<1x32x1xf32, #tpu.memory_space<vmem>>, vector<1x32x1xf32>
    %6 = vector.shape_cast %5 : vector<1x32x1xf32> to vector<32x1xf32>
    %7 = vector.broadcast %6 : vector<32x1xf32> to vector<32x128xf32>
    %8 = arith.addf %4, %7 : vector<32x128xf32>
    %c0_8 = arith.constant 0 : index
    %c0_9 = arith.constant 0 : index
    %c0_10 = arith.constant 0 : index
    %9 = vector.load %arg7[%c0_8, %c0_9, %c0_10] : memref<1x32x128xf32, #tpu.memory_space<vmem>>, vector<1x32x128xf32>
    %10 = vector.shape_cast %9 : vector<1x32x128xf32> to vector<32x128xf32>
    %11 = vector.shape_cast %8 : vector<32x128xf32> to vector<1x32x128xf32>
    tpu.vector_store %arg7[%c0_8, %c0_9, %c0_10], %11 {strides = array<i32>} : memref<1x32x128xf32, #tpu.memory_space<vmem>>, vector<1x32x128xf32>,
    return
  }
  func.func @transform_0(%arg0: i32, %arg1: i32, %arg2: i32) -> (i32, i32, i32) {
    %c0_i32 = arith.constant 0 : i32
    %c0_i32_0 = arith.constant 0 : i32
    return %arg0, %c0_i32, %arg1 : i32, i32, i32
  }
  func.func @transform_1(%arg0: i32, %arg1: i32, %arg2: i32) -> (i32, i32, i32) {
    %c0_i32 = arith.constant 0 : i32
    %c0_i32_0 = arith.constant 0 : i32
    return %arg0, %arg2, %c0_i32 : i32, i32, i32
  }
  func.func @transform_2(%arg0: i32, %arg1: i32, %arg2: i32) -> (i32, i32, i32) {
    %c0_i32 = arith.constant 0 : i32
    %c0_i32_0 = arith.constant 0 : i32
    return %arg0, %arg2, %c0_i32 : i32, i32, i32
  }
  func.func @transform_3(%arg0: i32, %arg1: i32, %arg2: i32) -> (i32, i32, i32) {
    %c0_i32 = arith.constant 0 : i32
    %c0_i32_0 = arith.constant 0 : i32
    return %arg0, %arg2, %c0_i32 : i32, i32, i32
  }
  func.func @transform_4(%arg0: i32, %arg1: i32, %arg2: i32) -> (i32, i32, i32) {
    %c0_i32 = arith.constant 0 : i32
    return %arg0, %arg2, %arg1 : i32, i32, i32
  }
}

</mosaic_0001>

<llo_original>
// kernel: tpu_custom_call.1
$region0: #{tpu_custom_call.1}
  #allocation0 [shape = 'u32[]', space=smem, size = 0x4, offset = 0x4, fixed_abs, tag = 'smem constant byte address 0x4 - core index']
  #allocation1 [shape = 'u32[72,128]{1,0:T(1,128)}', space=vmem, size = 0x9000, scoped, tag = 'internal scratch']
  %s0 = inlined_call_operand.vmem [shape: f32[1,16,256], index: 0, kind: input, shape index: {}]
  %s1 = inlined_call_operand.vmem [shape: f32[1,32,16], index: 1, kind: input, shape index: {}]
  %s2 = inlined_call_operand.vmem [shape: f32[1,32,1], index: 2, kind: input, shape index: {}]
  %s3 = inlined_call_operand.vmem [shape: f32[1,32,1], index: 3, kind: input, shape index: {}]
  %s4 = inlined_call_operand.hbm [shape: f32[1,32,256], index: 4, kind: output, shape index: {}]
  %s5 = sld [smem:[#allocation0]]
  $region87: #{tpu_custom_call.1} parent=0
    _
  %s7 = ssub.s32 1, %s5
  %s8 = scalar_select 0, %s7, %s5
  $region1: #{tpu_custom_call.1} parent=0
    #allocation2 [shape = 'u8[16384]{0}', space=vmem, size = 0x4000, scoped, tag = 'input window, operand 0']
    #allocation3 [shape = 'u8[32768]{0}', space=vmem, size = 0x8000, scoped, tag = 'output window, operand 0']
    #allocation4 [shape = 's32[2]{0}', space=sflag, size = 0x8, scoped, tag = 'scoped memory for tpu_custom_call.1']
    %9 = vsyncpa [#allocation4], 0
    %s10 = scalar_lea.sflag [#allocation4], 1
    %11 = vsyncpa %s10, 0
    loop: start=0, step=1, limit=4
    $region2: #{tpu_custom_call.1} parent=1 // loop_pre_header
      _
    $region3: #{tpu_custom_call.1} parent=1 // loop_header
      %s13 = sphi 0, %s17
      %p14 = scmp.ge.s32.totalorder %s13, 4
      %s20 = sphi 0, %s39
      %s21 = sphi 0, %s35
      %s22 = sphi 0, %s31
      %s23 = sphi 0, %s20
      %s24 = sphi 0, %s21
      %s25 = sphi 0, %s22
      %s26 = sphi 0, %s23
      %s27 = sphi 0, %s24
      %s28 = sphi 0, %s25
      %s44 = sphi 0, %s46
      %s47 = sphi 0, %s44
      %s48 = sphi 0, %s47
      %s64 = sphi 0, %s48
      %s72 = sphi 0, %s74
      %s75 = sphi 0, %s72
      %s76 = sphi 0, %s75
      %s92 = sphi 0, %s76
      %s100 = sphi 0, %s102
      %s103 = sphi 0, %s100
      %s104 = sphi 0, %s103
      %s120 = sphi 0, %s104
      %s128 = sphi 0, %s130
      %s131 = sphi 0, %s128
      %s132 = sphi 0, %s131
      %s148 = sphi 0, %s132
      %s158 = sphi 0, %s160
      %s161 = sphi 0, %s158
      %s162 = sphi 0, %s161
      %s178 = sphi 0, %s162
    $region4: #{tpu_custom_call.1} parent=1 // loop_header_branch
      %16 = sbr.rel (%p14) target = $region8
    $region5: #{tpu_custom_call.1} parent=1 // loop_body
      %s18 = ssub.s32 %s13, 1
      %s19 = ssub.s32 %s13, 2
      %s29 = sadd.s32 1, %s22
      %p30 = scmp.ge.s32.totalorder %s29, 1
      %s31 = scalar_select %p30, 0, %s29
      %s32 = sadd.s32 1, %s21
      %s33 = scalar_select %p30, %s32, %s21
      %p34 = scmp.ge.s32.totalorder %s33, 2
      %s35 = scalar_select %p34, 0, %s33
      %s36 = sadd.s32 1, %s20
      %s37 = scalar_select %p34, %s36, %s20
      %p38 = scmp.ge.s32.totalorder %s37, 1
      %s39 = scalar_select %p38, 0, %s37
      %s40 = ssub.s32 %s20, %s39
      %s41 = ssub.s32 %s21, %s35
      %s42 = sor.u32 %s40, %s41
      %p43 = scmp.eq.s32.totalorder %s42, 0
      %s45 = sadd.s32 %s44, 1
      %s46 = scalar_select %p43, %s44, %s45
      %p49 = pneg %p43
      %p50 = scmp.eq.s32.totalorder %s13, 1
      %p51 = por %p49, %p50
      %p52 = scmp.ne.s32.totalorder %s44, %s47
      %p53 = scmp.eq.s32.totalorder %s13, 0
      %p54 = por %p52, %p53
      %p55 = scmp.ne.s32.totalorder %s44, %s47
      %p56 = scmp.eq.s32.totalorder %s18, 1
      %p57 = por %p55, %p56
      %p58 = scmp.ne.s32.totalorder %s47, %s48
      %p59 = scmp.eq.s32.totalorder %s18, 0
      %p60 = por %p58, %p59
      %p61 = scmp.ne.s32.totalorder %s47, %s48
      %p62 = scmp.eq.s32.totalorder %s19, 1
      %p63 = por %p61, %p62
      %p65 = scmp.ne.s32.totalorder %s48, %s64
      %p66 = scmp.eq.s32.totalorder %s19, 0
      %p67 = por %p65, %p66
      %s68 = ssub.s32 %s20, %s39
      %s69 = ssub.s32 %s22, %s31
      %s70 = sor.u32 %s68, %s69
      %p71 = scmp.eq.s32.totalorder %s70, 0
      %s73 = sadd.s32 %s72, 1
      %s74 = scalar_select %p71, %s72, %s73
      %p77 = pneg %p71
      %p78 = scmp.eq.s32.totalorder %s13, 1
      %p79 = por %p77, %p78
      %p80 = scmp.ne.s32.totalorder %s72, %s75
      %p81 = scmp.eq.s32.totalorder %s13, 0
      %p82 = por %p80, %p81
      %p83 = scmp.ne.s32.totalorder %s72, %s75
      %p84 = scmp.eq.s32.totalorder %s18, 1
      %p85 = por %p83, %p84
      %p86 = scmp.ne.s32.totalorder %s75, %s76
      %p87 = scmp.eq.s32.totalorder %s18, 0
      %p88 = por %p86, %p87
      %p89 = scmp.ne.s32.totalorder %s75, %s76
      %p90 = scmp.eq.s32.totalorder %s19, 1
      %p91 = por %p89, %p90
      %p93 = scmp.ne.s32.totalorder %s76, %s92
      %p94 = scmp.eq.s32.totalorder %s19, 0
      %p95 = por %p93, %p94
      %s96 = ssub.s32 %s20, %s39
      %s97 = ssub.s32 %s22, %s31
      %s98 = sor.u32 %s96, %s97
      %p99 = scmp.eq.s32.totalorder %s98, 0
      %s101 = sadd.s32 %s100, 1
      %s102 = scalar_select %p99, %s100, %s101
      %p105 = pneg %p99
      %p106 = scmp.eq.s32.totalorder %s13, 1
      %p107 = por %p105, %p106
      %p108 = scmp.ne.s32.totalorder %s100, %s103
      %p109 = scmp.eq.s32.totalorder %s13, 0
      %p110 = por %p108, %p109
      %p111 = scmp.ne.s32.totalorder %s100, %s103
      %p112 = scmp.eq.s32.totalorder %s18, 1
      %p113 = por %p111, %p112
      %p114 = scmp.ne.s32.totalorder %s103, %s104
      %p115 = scmp.eq.s32.totalorder %s18, 0
      %p116 = por %p114, %p115
      %p117 = scmp.ne.s32.totalorder %s103, %s104
      %p118 = scmp.eq.s32.totalorder %s19, 1
      %p119 = por %p117, %p118
      %p121 = scmp.ne.s32.totalorder %s104, %s120
      %p122 = scmp.eq.s32.totalorder %s19, 0
      %p123 = por %p121, %p122
      %s124 = ssub.s32 %s20, %s39
      %s125 = ssub.s32 %s22, %s31
      %s126 = sor.u32 %s124, %s125
      %p127 = scmp.eq.s32.totalorder %s126, 0
      %s129 = sadd.s32 %s128, 1
      %s130 = scalar_select %p127, %s128, %s129
      %p133 = pneg %p127
      %p134 = scmp.eq.s32.totalorder %s13, 1
      %p135 = por %p133, %p134
      %p136 = scmp.ne.s32.totalorder %s128, %s131
      %p137 = scmp.eq.s32.totalorder %s13, 0
      %p138 = por %p136, %p137
      %p139 = scmp.ne.s32.totalorder %s128, %s131
      %p140 = scmp.eq.s32.totalorder %s18, 1
      %p141 = por %p139, %p140
      %p142 = scmp.ne.s32.totalorder %s131, %s132
      %p143 = scmp.eq.s32.totalorder %s18, 0
      %p144 = por %p142, %p143
      %p145 = scmp.ne.s32.totalorder %s131, %s132
      %p146 = scmp.eq.s32.totalorder %s19, 1
      %p147 = por %p145, %p146
      %p149 = scmp.ne.s32.totalorder %s132, %s148
      %p150 = scmp.eq.s32.totalorder %s19, 0
      %p151 = por %p149, %p150
      %s152 = ssub.s32 %s20, %s39
      %s153 = ssub.s32 %s22, %s31
      %s154 = sor.u32 %s152, %s153
      %s155 = ssub.s32 %s21, %s35
      %s156 = sor.u32 %s154, %s155
      %p157 = scmp.eq.s32.totalorder %s156, 0
      %s159 = sadd.s32 %s158, 1
      %s160 = scalar_select %p157, %s158, %s159
      %p163 = pneg %p157
      %p164 = scmp.eq.s32.totalorder %s13, 1
      %p165 = por %p163, %p164
      %p166 = scmp.ne.s32.totalorder %s158, %s161
      %p167 = scmp.eq.s32.totalorder %s13, 0
      %p168 = por %p166, %p167
      %p169 = scmp.ne.s32.totalorder %s158, %s161
      %p170 = scmp.eq.s32.totalorder %s18, 1
      %p171 = por %p169, %p170
      %p172 = scmp.ne.s32.totalorder %s161, %s162
      %p173 = scmp.eq.s32.totalorder %s18, 0
      %p174 = por %p172, %p173
      %p175 = scmp.ne.s32.totalorder %s161, %s162
      %p176 = scmp.eq.s32.totalorder %s19, 1
      %p177 = por %p175, %p176
      %p179 = scmp.ne.s32.totalorder %s162, %s178
      %p180 = scmp.eq.s32.totalorder %s19, 0
      %p181 = por %p179, %p180
      %p182 = scmp.le.s32.totalorder 1, %s13
      %p183 = scmp.lt.s32.totalorder %s13, 3
      %p184 = pnand %p182, %p183
      %p185 = pneg %p184
      // Predicated region
      $region9: #{tpu_custom_call.1} parent=5 // pred_check
        _
      $region10: #{tpu_custom_call.1} parent=5 // pred_check_branch
        %187 = sbr.rel (%p184) target = $region12
      $region11: #{tpu_custom_call.1} parent=5 // pred_region
        %s188 = ssub.s32 %s13, 1
        // Predicated region
        $region13: #{tpu_custom_call.1} parent=11 // pred_check
          %p189 = pneg %p88
        $region14: #{tpu_custom_call.1} parent=11 // pred_check_branch
          %191 = sbr.rel (%p189) target = $region16
        $region15: #{tpu_custom_call.1} parent=11 // pred_region
          %s192 = smul.u32 4, %s25
          %p193 = scmp.lt.s32.totalorder %s23, 0
          %s194 = scalar_select %p193, %s23, 0
          %p195 = scmp.lt.s32.totalorder %s192, 3
          %s196 = scalar_select %p195, %s192, 3
          %s197 = smul.addr %s194, 4
          %s198 = sadd.s32 %s196, %s197
          %s199 = smul.addr %s198, 8
          %s200 = scalar_lea.vmem %s1, %s199
          %s201 = smul.u32 4, %s25
        $region16: #{tpu_custom_call.1} parent=11 // pred_fallthru
          _
        // Predicated region
        $region17: #{tpu_custom_call.1} parent=11 // pred_check
          %p202 = pneg %p116
        $region18: #{tpu_custom_call.1} parent=11 // pred_check_branch
          %204 = sbr.rel (%p202) target = $region20
        $region19: #{tpu_custom_call.1} parent=11 // pred_region
          %s205 = smul.u32 4, %s25
          %p206 = scmp.lt.s32.totalorder %s23, 0
          %s207 = scalar_select %p206, %s23, 0
          %p208 = scmp.lt.s32.totalorder %s205, 3
          %s209 = scalar_select %p208, %s205, 3
          %s210 = smul.addr %s207, 4
          %s211 = sadd.s32 %s209, %s210
          %s212 = smul.addr %s211, 8
          %s213 = scalar_lea.vmem %s2, %s212
          %s214 = smul.u32 4, %s25
        $region20: #{tpu_custom_call.1} parent=11 // pred_fallthru
          _
        // Predicated region
        $region21: #{tpu_custom_call.1} parent=11 // pred_check
          %p215 = pneg %p144
        $region22: #{tpu_custom_call.1} parent=11 // pred_check_branch
          %217 = sbr.rel (%p215) target = $region24
        $region23: #{tpu_custom_call.1} parent=11 // pred_region
          %s218 = smul.u32 4, %s25
          %p219 = scmp.lt.s32.totalorder %s23, 0
          %s220 = scalar_select %p219, %s23, 0
          %p221 = scmp.lt.s32.totalorder %s218, 3
          %s222 = scalar_select %p221, %s218, 3
          %s223 = smul.addr %s220, 4
          %s224 = sadd.s32 %s222, %s223
          %s225 = smul.addr %s224, 8
          %s226 = scalar_lea.vmem %s3, %s225
          %s227 = smul.u32 4, %s25
        $region24: #{tpu_custom_call.1} parent=11 // pred_fallthru
          _
      $region12: #{tpu_custom_call.1} parent=5 // pred_fallthru
        _
      %p228 = scmp.lt.s32.totalorder %s13, 2
      // Predicated region
      $region25: #{tpu_custom_call.1} parent=5 // pred_check
        %p229 = pneg %p228
      $region26: #{tpu_custom_call.1} parent=5 // pred_check_branch
        %231 = sbr.rel (%p229) target = $region28
      $region27: #{tpu_custom_call.1} parent=5 // pred_region
        // Predicated region
        $region29: #{tpu_custom_call.1} parent=27 // pred_check
          %p232 = pneg %p54
        $region30: #{tpu_custom_call.1} parent=27 // pred_check_branch
          %234 = sbr.rel (%p232) target = $region32
        $region31: #{tpu_custom_call.1} parent=27 // pred_region
          %s235 = sand.u32 %s44, 1
          %s236 = sand.u32 %s44, 1
          %s237 = smul.addr %s236, 16
          %s238 = scalar_lea.vmem [#allocation2], %s237
          %s239 = smul.addr %s20, 4
          %s240 = sadd.s32 %s21, %s239
          %s241 = smul.addr %s240, 8
          %s242 = scalar_lea.vmem %s0, %s241
          // Predicated region
          $region33: #{tpu_custom_call.1} parent=31 // pred_check
            _
          $region34: #{tpu_custom_call.1} parent=31 // pred_check_branch
            %244 = sbr.rel (0) target = $region36
          $region35: #{tpu_custom_call.1} parent=31 // pred_region
            // Predicated region
            $region37: #{tpu_custom_call.1} parent=35 // pred_check
              _
            $region38: #{tpu_custom_call.1} parent=35 // pred_check_branch
              %246 = sbr.rel (0) target = $region40
            $region39: #{tpu_custom_call.1} parent=35 // pred_region
              // Predicated region
              $region52: #{tpu_custom_call.1} parent=39 // pred_check
                _
              $region53: #{tpu_custom_call.1} parent=39 // pred_check_branch
                %264 = sbr.rel (0) target = $region55
              $region54: #{tpu_custom_call.1} parent=39 // pred_region
                loop: start=0, step=1, limit=1
                $region56: #{tpu_custom_call.1} parent=54 // loop_pre_header
                  _
                $region57: #{tpu_custom_call.1} parent=54 // loop_header
                  %s266 = sphi 0, %s270
                  %p267 = scmp.ge.s32.totalorder %s266, 1
                  %s271 = sphi %s242, %s242
                  %s272 = sphi %s238, %s238
                $region58: #{tpu_custom_call.1} parent=54 // loop_header_branch
                  %269 = sbr.rel (%p267) target = $region62
                $region59: #{tpu_custom_call.1} parent=54 // loop_body
                  %v273 = vld [vmem:[%s271] sm:$0xff]
                  %274 = vst [vmem:[%s272] sm:$0xff] %v273
                  %v275 = vld [vmem:[%s271 + $0x10] sm:$0xff]
                  %276 = vst [vmem:[%s272 + $0x8] sm:$0xff] %v275
                $region60: #{tpu_custom_call.1} parent=54 // loop_footer
                  %s270 = sadd.s32 1, %s266
                $region61: #{tpu_custom_call.1} parent=54 // loop_footer_branch
                  %265 = sbr.rel target = $region57
                $region62: #{tpu_custom_call.1} parent=54 // loop_exit
                  _
              $region55: #{tpu_custom_call.1} parent=39 // pred_fallthru
                _
              // Predicated region
              $region63: #{tpu_custom_call.1} parent=39 // pred_check
                _
              $region64: #{tpu_custom_call.1} parent=39 // pred_check_branch
                %278 = sbr.rel target = $region66
              $region65: #{tpu_custom_call.1} parent=39 // pred_region
                _
              $region66: #{tpu_custom_call.1} parent=39 // pred_fallthru
                _
            $region40: #{tpu_custom_call.1} parent=35 // pred_fallthru
              _
            // Predicated region
            $region41: #{tpu_custom_call.1} parent=35 // pred_check
              _
            $region42: #{tpu_custom_call.1} parent=35 // pred_check_branch
              %248 = sbr.rel target = $region44
            $region43: #{tpu_custom_call.1} parent=35 // pred_region
              %s250 = ssub.s32 256, 1
              loop: start=0, step=1, limit=1
              $region45: #{tpu_custom_call.1} parent=43 // loop_pre_header
                _
              $region46: #{tpu_custom_call.1} parent=43 // loop_header
                %s252 = sphi 0, %s256
                %p253 = scmp.ge.s32.totalorder %s252, 1
                %s257 = sphi %s242, %s242
                %s258 = sphi %s238, %s238
              $region47: #{tpu_custom_call.1} parent=43 // loop_header_branch
                %255 = sbr.rel (%p253) target = $region51
              $region48: #{tpu_custom_call.1} parent=43 // loop_body
                %v259 = vld [vmem:[%s257] sm:%s250]
                %260 = vst [vmem:[%s258] sm:%s250] %v259
                %v261 = vld [vmem:[%s257 + $0x10] sm:%s250]
                %262 = vst [vmem:[%s258 + $0x8] sm:%s250] %v261
              $region49: #{tpu_custom_call.1} parent=43 // loop_footer
                %s256 = sadd.s32 1, %s252
              $region50: #{tpu_custom_call.1} parent=43 // loop_footer_branch
                %251 = sbr.rel target = $region46
              $region51: #{tpu_custom_call.1} parent=43 // loop_exit
                _
            $region44: #{tpu_custom_call.1} parent=35 // pred_fallthru
              _
          $region36: #{tpu_custom_call.1} parent=31 // pred_fallthru
            _
          %279 = vnop
        $region32: #{tpu_custom_call.1} parent=27 // pred_fallthru
          _
      $region28: #{tpu_custom_call.1} parent=5 // pred_fallthru
        _
      %p280 = scmp.le.s32.totalorder 1, %s13
      %p281 = scmp.lt.s32.totalorder %s13, 3
      %p282 = pnand %p280, %p281
      %p283 = pneg %p282
      // Predicated region
      $region67: #{tpu_custom_call.1} parent=5 // pred_check
        _
      $region68: #{tpu_custom_call.1} parent=5 // pred_check_branch
        %285 = sbr.rel (%p282) target = $region70
      $region69: #{tpu_custom_call.1} parent=5 // pred_region
        %s286 = ssub.s32 %s13, 1
        %s287 = sand.u32 %s47, 1
        %s288 = sand.u32 %s47, 1
        %s289 = smul.addr %s288, 16
        %s290 = scalar_lea.vmem [#allocation2], %s289
        // Predicated region
        $region71: #{tpu_custom_call.1} parent=69 // pred_check
          %p291 = pneg %p60
        $region72: #{tpu_custom_call.1} parent=69 // pred_check_branch
          %293 = sbr.rel (%p291) target = $region74
        $region73: #{tpu_custom_call.1} parent=69 // pred_region
          _
        $region74: #{tpu_custom_call.1} parent=69 // pred_fallthru
          _
        %s294 = sand.u32 %s47, 1
        %s295 = sand.u32 %s47, 1
        %s296 = smul.addr %s295, 16
        %s297 = scalar_lea.vmem [#allocation2], %s296
        %p298 = pneg %p60
        %p299 = pneg %p57
        %s300 = smul.u32 4, %s25
        %p301 = scmp.lt.s32.totalorder %s23, 0
        %s302 = scalar_select %p301, %s23, 0
        %p303 = scmp.lt.s32.totalorder %s300, 3
        %s304 = scalar_select %p303, %s300, 3
        %s305 = smul.addr %s302, 4
        %s306 = sadd.s32 %s304, %s305
        %s307 = smul.addr %s306, 8
        %s308 = scalar_lea.vmem %s1, %s307
        %p309 = pneg %p88
        %p310 = pneg %p85
        %s311 = smul.u32 4, %s25
        %p312 = scmp.lt.s32.totalorder %s23, 0
        %s313 = scalar_select %p312, %s23, 0
        %p314 = scmp.lt.s32.totalorder %s311, 3
        %s315 = scalar_select %p314, %s311, 3
        %s316 = smul.addr %s313, 4
        %s317 = sadd.s32 %s315, %s316
        %s318 = smul.addr %s317, 8
        %s319 = scalar_lea.vmem %s2, %s318
        %p320 = pneg %p116
        %p321 = pneg %p113
        %s322 = smul.u32 4, %s25
        %p323 = scmp.lt.s32.totalorder %s23, 0
        %s324 = scalar_select %p323, %s23, 0
        %p325 = scmp.lt.s32.totalorder %s322, 3
        %s326 = scalar_select %p325, %s322, 3
        %s327 = smul.addr %s324, 4
        %s328 = sadd.s32 %s326, %s327
        %s329 = smul.addr %s328, 8
        %s330 = scalar_lea.vmem %s3, %s329
        %p331 = pneg %p144
        %p332 = pneg %p141
        %p333 = pneg %p174
        %p334 = pneg %p171
        %s335 = sand.u32 %s161, 1
        %s336 = scalar_lea.sflag [#allocation4], %s335
        %s337 = sand.u32 %s161, 1
        %s338 = smul.addr %s337, 32
        %s339 = scalar_lea.vmem [#allocation3], %s338
        %s340 = smul.u32 4, %s25
        %p341 = scmp.lt.s32.totalorder %s23, 0
        %s342 = scalar_select %p341, %s23, 0
        %p343 = scmp.lt.s32.totalorder %s340, 3
        %s344 = scalar_select %p343, %s340, 3
        %s345 = smul.addr %s342, 4
        %s346 = sadd.s32 %s344, %s345
        %s347 = smul.addr %s346, 8
        %s348 = scalar_lea.vmem %s1, %s347
        %s349 = smul.u32 4, %s25
        %s350 = smul.u32 4, %s25
        %p351 = scmp.lt.s32.totalorder %s23, 0
        %s352 = scalar_select %p351, %s23, 0
        %p353 = scmp.lt.s32.totalorder %s350, 3
        %s354 = scalar_select %p353, %s350, 3
        %s355 = smul.addr %s352, 4
        %s356 = sadd.s32 %s354, %s355
        %s357 = smul.addr %s356, 8
        %s358 = scalar_lea.vmem %s2, %s357
        %s359 = smul.u32 4, %s25
        %s360 = smul.u32 4, %s25
        %p361 = scmp.lt.s32.totalorder %s23, 0
        %s362 = scalar_select %p361, %s23, 0
        %p363 = scmp.lt.s32.totalorder %s360, 3
        %s364 = scalar_select %p363, %s360, 3
        %s365 = smul.addr %s362, 4
        %s366 = sadd.s32 %s364, %s365
        %s367 = smul.addr %s366, 8
        %s368 = scalar_lea.vmem %s3, %s367
        %s369 = smul.u32 4, %s25
        %s370 = smul.u32 4, %s25
        %v371 = vld [vmem:[%s348] sm:$0xff]
        %v372 = vld [vmem:[%s348 + $0x8] sm:$0xff]
        %v373 = vld [vmem:[%s348 + $0x10] sm:$0xff]
        %v374 = vld [vmem:[%s348 + $0x18] sm:$0xff]
        %v375 = vld [vmem:[%s290] sm:$0xff]
        %v376 = vld [vmem:[%s290 + $0x8] sm:$0xff]
        %v377 = vld [vmem:[%s358] sm:$0xff]
        %v378 = vld [vmem:[%s358 + $0x8] sm:$0xff]
        %v379 = vld [vmem:[%s358 + $0x10] sm:$0xff]
        %v380 = vld [vmem:[%s358 + $0x18] sm:$0xff]
        %382 = vset.pattern.permute.xlu0 0
        %383 = vperm.xlu0 %382, %v377
        %v384 = vpop.permute.xlu0 %383
        %387 = vset.pattern.permute.xlu0 0
        %388 = vperm.xlu0 %387, %v378
        %v389 = vpop.permute.xlu0 %388
        %392 = vset.pattern.permute.xlu0 0
        %393 = vperm.xlu0 %392, %v379
        %v394 = vpop.permute.xlu0 %393
        %397 = vset.pattern.permute.xlu0 0
        %398 = vperm.xlu0 %397, %v380
        %v399 = vpop.permute.xlu0 %398
        %vm401 = vcmask 130048
        %v403 = vsel %vm401, %v371, 0
        %v406 = vsel %vm401, %v372, 0
        %v409 = vsel %vm401, %v373, 0
        %v412 = vsel %vm401, %v374, 0
        %414 = vmatpush.msra.mxu0 0.0
        %415 = vmatpush.msra.mxu0 0.0
        %416 = vmatpush.msra.mxu0 0.0
        %417 = vmatpush.msra.mxu0 0.0
        %418 = vmatpush.msra.mxu0 0.0
        %419 = vmatpush.msra.mxu0 0.0
        %420 = vmatpush.msra.mxu0 0.0
        %421 = vmatpush.msra.mxu0 0.0
        %422 = vmatpush.msra.mxu0 0.0
        %423 = vmatpush.msra.mxu0 0.0
        %424 = vmatpush.msra.mxu0 0.0
        %425 = vmatpush.msra.mxu0 0.0
        %426 = vmatpush.msra.mxu0 0.0
        %427 = vmatpush.msra.mxu0 0.0
        %428 = vmatpush.msra.mxu0 %v376
        %429 = vmatpush.msra.mxu0 %v375
        %430 = vmatmul.f32.gmra.mxu0 %v403
        %v431 = vpop.f32.mrf.mxu0
        %v432 = vadd.f32 %v384, %v431
        %433 = vmatmul.f32.gmra.mxu0 %v406
        %v434 = vpop.f32.mrf.mxu0
        %v435 = vadd.f32 %v389, %v434
        %436 = vmatmul.f32.gmra.mxu0 %v409
        %v437 = vpop.f32.mrf.mxu0
        %v438 = vadd.f32 %v394, %v437
        %439 = vmatmul.f32.gmra.mxu0 %v412
        %v440 = vpop.f32.mrf.mxu0
        %v441 = vadd.f32 %v399, %v440
        %442 = vdwg.mxu0
        %443 = vst [vmem:[%s339] sm:$0xff] %v432
        %444 = vst [vmem:[%s339 + $0x8] sm:$0xff] %v435
        %445 = vst [vmem:[%s339 + $0x10] sm:$0xff] %v438
        %446 = vst [vmem:[%s339 + $0x18] sm:$0xff] %v441
        %s447 = sand.u32 %s161, 1
        %s448 = scalar_lea.sflag [#allocation4], %s447
        %s449 = sand.u32 %s161, 1
        %s450 = smul.addr %s449, 32
        %s451 = scalar_lea.vmem [#allocation3], %s450
        // Predicated region
        $region75: #{tpu_custom_call.1} parent=69 // pred_check
          %p452 = pneg %p171
        $region76: #{tpu_custom_call.1} parent=69 // pred_check_branch
          %454 = sbr.rel (%p452) target = $region78
        $region77: #{tpu_custom_call.1} parent=69 // pred_region
          %s455 = smul.u32 4, %s25
          %457 = vsyncadd %s448, 0
          %s458 = smul.addr %s455, 2
          %s459 = sadd.s32 %s24, %s458
          %s460 = smul.addr %s23, 8
          %s461 = sadd.s32 %s459, %s460
          %s462 = smul.addr %s461, 8
          %s463 = scalar_lea.hbm %s4, %s462
          %s464 = sshll.u32 %s451, 4
          %s465 = int_to_ptr.vmem [resolvable:$true] %s464
          %s466 = sshll.u32 %s463, 4
          %s467 = int_to_ptr.hbm [resolvable:$true] %s466
          %472 = dma.vmem_to_hbm [thread:$0]  %s465, 512, %s467, %s448, 128, 256, 8
        $region78: #{tpu_custom_call.1} parent=69 // pred_fallthru
          _
      $region70: #{tpu_custom_call.1} parent=5 // pred_fallthru
        _
      %p473 = scmp.le.s32.totalorder 2, %s13
      // Predicated region
      $region79: #{tpu_custom_call.1} parent=5 // pred_check
        %p474 = pneg %p473
      $region80: #{tpu_custom_call.1} parent=5 // pred_check_branch
        %476 = sbr.rel (%p474) target = $region82
      $region81: #{tpu_custom_call.1} parent=5 // pred_region
        %s477 = ssub.s32 %s13, 2
        // Predicated region
        $region83: #{tpu_custom_call.1} parent=81 // pred_check
          %p478 = pneg %p177
        $region84: #{tpu_custom_call.1} parent=81 // pred_check_branch
          %480 = sbr.rel (%p478) target = $region86
        $region85: #{tpu_custom_call.1} parent=81 // pred_region
          %s481 = sand.u32 %s162, 1
          %s482 = scalar_lea.sflag [#allocation4], %s481
          %s483 = sand.u32 %s162, 1
          %s484 = smul.addr %s483, 32
          %s485 = scalar_lea.vmem [#allocation3], %s484
          %487 = dma.done %s482, 512
        $region86: #{tpu_custom_call.1} parent=81 // pred_fallthru
          _
      $region82: #{tpu_custom_call.1} parent=5 // pred_fallthru
        _
    $region6: #{tpu_custom_call.1} parent=1 // loop_footer
      %s17 = sadd.s32 1, %s13
    $region7: #{tpu_custom_call.1} parent=1 // loop_footer_branch
      %12 = sbr.rel target = $region3
    $region8: #{tpu_custom_call.1} parent=1 // loop_exit
      _
    %488 = vsyncpa [#allocation4], 1
    %s489 = scalar_lea.sflag [#allocation4], 1
    %490 = vsyncpa %s489, 1

</llo_original>
